<compile_context>
chip_gen: v7x
topology: tpu7x:2x2x1
jax: 0.10.0
libtpu: 0.0.40
codegen_flags: <defaults>
</compile_context>

<pallas_src>
import functools

import jax
import jax.numpy as jnp
from jax.experimental import pallas as pl
from jax.experimental.pallas import tpu as pltpu

EPS = 1e-5


# ----------------------------- kernel body ---------------------------------
def _conv3x3_instnorm_cm(x_op, w_ref, *, H, W, fold_dx, first_col, last_col, relu):
    """ReflPad(1) + Conv3x3 + InstanceNorm2d(affine=False), channel-major.

    x_op   : (Cin, H*W) in the MXU operand dtype (bf16 or f32).
    w_ref  : (3, Cout, 3*Cin)  if fold_dx  (dx-major, cin-minor contraction)
             (3, 3, Cout, Cin) otherwise.
    Returns the normalized result as (Cout, H*W) float32 (optionally ReLU'd).
    """
    C, HW = x_op.shape

    # One-pixel lane shifts (wrapped lanes are replaced through the masks).
    def shift_left(a):   # a[p + 1]
        return jnp.concatenate([a[:, 1:], a[:, :1]], axis=1)

    def shift_right(a):  # a[p - 1]
        return jnp.concatenate([a[:, -1:], a[:, :-1]], axis=1)

    # Rows y-1 / y / y+1 with top/bottom reflection, built directly in the
    # flattened (C, H*W) layout (contiguous W-wide chunks along the lanes).
    rows = (
        jnp.concatenate([x_op[:, W:2 * W], x_op[:, :(H - 1) * W]], axis=1),        # y-1
        x_op,                                                                      # y
        jnp.concatenate([x_op[:, W:], x_op[:, (H - 2) * W:(H - 1) * W]], axis=1),  # y+1
    )

    Cout = w_ref.shape[1] if fold_dx else w_ref.shape[2]
    acc = jnp.zeros((Cout, HW), jnp.float32)
    for dy in range(3):
        r = rows[dy]
        sl = shift_left(r)   # column x+1 in the row interior
        sr = shift_right(r)  # column x-1 in the row interior
        taps = (
            jnp.where(first_col, sl, sr),   # dx=0: column x-1 (reflect at x==0)
            r,                              # dx=1: column x
            jnp.where(last_col, sr, sl),    # dx=2: column x+1 (reflect at x==W-1)
        )
        if fold_dx:
            # Small Cin: fold dx into the contraction -> depth 3*Cin, 1 dot/dy.
            patch = jnp.concatenate(taps, axis=0)                       # (3C, HW)
            acc = acc + jnp.dot(w_ref[dy], patch,
                                preferred_element_type=jnp.float32)
        else:
            # Large Cin: Cin already fills the MXU; per-tap dots avoid the
            # (3*Cin, HW) patch buffer entirely.
            for dx in range(3):
                acc = acc + jnp.dot(w_ref[dy, dx], taps[dx],
                                    preferred_element_type=jnp.float32)

    # NOTE: the Conv2d bias is intentionally omitted -- a per-channel bias
    # right before an affine=False InstanceNorm cancels exactly in the mean
    # subtraction and leaves the variance unchanged.

    # InstanceNorm2d(affine=False): two-pass stats in f32 over the lane axis.
    inv_hw = 1.0 / float(HW)
    mean = jnp.sum(acc, axis=1, keepdims=True) * inv_hw
    centered = acc - mean
    var = jnp.sum(centered * centered, axis=1, keepdims=True) * inv_hw
    y = centered * jax.lax.rsqrt(var + EPS)
    if relu:
        y = jnp.maximum(y, 0.0)
    return y                                                            # (Cout, HW) f32


def _resblock_kernel(x_ref, w1_ref, w2_ref, out_ref, *, H, W, fold_dx, conv_dtype):
    C = x_ref.shape[1]
    HW = H * W
    x_chw = x_ref[0]                                      # (C, HW) f32, lane-dense load

    # Column masks for the width-direction reflection (built once, reused by
    # both stages; hoisted so they are not re-materialized per tap).
    col = jax.lax.broadcasted_iota(jnp.int32, (C, HW), 1) % W
    first_col = col == 0
    last_col = col == W - 1

    # Stage 1: ReflPad -> Conv3x3 -> InstanceNorm -> ReLU   (stays in VMEM).
    h = _conv3x3_instnorm_cm(x_chw.astype(conv_dtype), w1_ref, H=H, W=W,
                             fold_dx=fold_dx, first_col=first_col,
                             last_col=last_col, relu=True)
    # Stage 2: ReflPad -> Conv3x3 -> InstanceNorm, then residual add with the
    # already-resident x; everything channel-major, lane-dense store.
    y = _conv3x3_instnorm_cm(h.astype(conv_dtype), w2_ref, H=H, W=W,
                             fold_dx=fold_dx, first_col=first_col,
                             last_col=last_col, relu=False)

    out_ref[0] = (y + x_chw).astype(out_ref.dtype)


# ------------------------------- wrapper ------------------------------------
def _vmem_limit_bytes(C, H, W, conv_dtype, fold_dx):
    """Honest VMEM estimate (with headroom), capped below v7x's 64 MiB/TC."""
    f32 = 4
    cb = jnp.dtype(conv_dtype).itemsize
    HW = H * W
    act_f32 = C * HW * f32                    # one f32 (C, HW) activation plane
    act_cd = C * HW * cb                      # same plane in the operand dtype
    weights = 2 * 2 * 9 * C * C * cb          # both weights, double-buffered
    need = (4 * act_f32                       # x + out, double-buffered
            + weights
            + act_f32                         # h (f32), spans both stages
            + act_f32                         # f32 conv accumulator
            + (11 if fold_dx else 9) * act_cd  # operand-prep temporaries
            + 2 * C * HW                      # column masks
            + (4 << 20))                      # Mosaic-internal scratch headroom
    return int(min(max(need, 8 << 20), 56 << 20))


def residual_block_forward(x_nchw, w1, b1, w2, b2, *, conv_dtype=jnp.bfloat16):
    """CycleGAN ResidualBlock forward.

    x_nchw : (N, C, H, W) float32
    w1, w2 : (3, 3, C, C) HWIO conv weights
    b1, b2 : (C,) conv biases -- accepted for interface parity but unused
             (they cancel in the affine=False InstanceNorm after each conv).
    conv_dtype : dtype of the MXU operands (bf16 default on all generations,
             incl. v5e).  Accumulation / stats / ReLU / residual stay f32.
    """
    del b1, b2
    N, C, H, W = x_nchw.shape
    assert H >= 2 and W >= 2, "ReflectionPad2d(1) needs H, W >= 2"
    HW = H * W
    fold_dx = C < 128

    x_flat = x_nchw.reshape(N, C, HW).astype(jnp.float32)        # free reshape

    if fold_dx:
        # (3, 3, Cin, Cout) -> (3[dy], Cout, 3*Cin), dx-major / cin-minor on
        # the contraction axis (matches the in-kernel tap-concat order).
        w1_k = jnp.transpose(w1, (0, 3, 1, 2)).reshape(3, C, 3 * C).astype(conv_dtype)
        w2_k = jnp.transpose(w2, (0, 3, 1, 2)).reshape(3, C, 3 * C).astype(conv_dtype)
        w_block = (3, C, 3 * C)
        w_index_map = lambda n: (0, 0, 0)
    else:
        # (3, 3, Cin, Cout) -> (3, 3, Cout, Cin): per-tap (Cout, Cin) lhs.
        w1_k = jnp.transpose(w1, (0, 1, 3, 2)).astype(conv_dtype)
        w2_k = jnp.transpose(w2, (0, 1, 3, 2)).astype(conv_dtype)
        w_block = (3, 3, C, C)
        w_index_map = lambda n: (0, 0, 0, 0)

    kernel = functools.partial(_resblock_kernel, H=H, W=W, fold_dx=fold_dx,
                               conv_dtype=conv_dtype)

    out_flat = pl.pallas_call(
        kernel,
        out_shape=jax.ShapeDtypeStruct((N, C, HW), jnp.float32),
        grid_spec=pltpu.PrefetchScalarGridSpec(
            num_scalar_prefetch=0,
            grid=(N,),
            in_specs=[
                pl.BlockSpec((1, C, HW), lambda n: (n, 0, 0)),
                pl.BlockSpec(w_block, w_index_map),   # grid-invariant: DMA'd once
                pl.BlockSpec(w_block, w_index_map),   # grid-invariant: DMA'd once
            ],
            out_specs=pl.BlockSpec((1, C, HW), lambda n: (n, 0, 0)),
        ),
        compiler_params=pltpu.CompilerParams(
            dimension_semantics=("parallel",),
            vmem_limit_bytes=_vmem_limit_bytes(C, H, W, conv_dtype, fold_dx),
        ),
    )(x_flat, w1_k, w2_k)

    return out_flat.reshape(N, C, H, W)


# --------------------------- pure-JAX reference -----------------------------
def _reference(x, w1, b1, w2, b2):
    def conv_in(x_nchw, w, b):
        xp = jnp.pad(x_nchw, ((0, 0), (0, 0), (1, 1), (1, 1)), mode="reflect")
        y = jax.lax.conv_general_dilated(
            xp, w, (1, 1), "VALID",
            dimension_numbers=("NCHW", "HWIO", "NCHW"))
        y = y + b[None, :, None, None]
        mean = y.mean(axis=(2, 3), keepdims=True)
        var = ((y - mean) ** 2).mean(axis=(2, 3), keepdims=True)
        return (y - mean) * jax.lax.rsqrt(var + EPS)

    h = jnp.maximum(conv_in(x, w1, b1), 0.0)
    return x + conv_in(h, w2, b2)


def _make_inputs(key, N, C, H, W):
    kx, kw1, kb1, kw2, kb2 = jax.random.split(key, 5)
    x = jax.random.normal(kx, (N, C, H, W), dtype=jnp.float32)
    w1 = 0.1 * jax.random.normal(kw1, (3, 3, C, C), dtype=jnp.float32)
    b1 = 0.1 * jax.random.normal(kb1, (C,), dtype=jnp.float32)
    w2 = 0.1 * jax.random.normal(kw2, (3, 3, C, C), dtype=jnp.float32)
    b2 = 0.1 * jax.random.normal(kb2, (C,), dtype=jnp.float32)
    return x, w1, b1, w2, b2


if __name__ == "__main__":
    key = jax.random.PRNGKey(0)
    k1, k2 = jax.random.split(key)

    # --- Test 1: small channel count (fold_dx / 3*Cin-deep contraction path).
    N, C, H, W = 2, 4, 16, 16
    x, w1, b1, w2, b2 = _make_inputs(k1, N, C, H, W)
    ref = jax.block_until_ready(_reference(x, w1, b1, w2, b2))

    out_f32 = jax.block_until_ready(
        residual_block_forward(x, w1, b1, w2, b2, conv_dtype=jnp.float32))
    assert out_f32.shape == (N, C, H, W)
    assert jnp.allclose(out_f32, ref, atol=1e-4, rtol=1e-4), "f32 kernel mismatch"

    out_bf16 = jax.block_until_ready(
        residual_block_forward(x, w1, b1, w2, b2))            # bf16 default path
    assert float(jnp.max(jnp.abs(out_bf16 - ref))) < 1e-1, "bf16 kernel drifted"

    # --- Test 2: C >= 128 (per-tap MXU path, no 3*Cin patch).
    N2, C2, H2, W2 = 1, 128, 8, 8
    x2, w12, b12, w22, b22 = _make_inputs(k2, N2, C2, H2, W2)
    ref2 = jax.block_until_ready(_reference(x2, w12, b12, w22, b22))
    out2 = jax.block_until_ready(
        residual_block_forward(x2, w12, b12, w22, b22, conv_dtype=jnp.float32))
    assert jnp.allclose(out2, ref2, atol=5e-4, rtol=5e-4), "per-tap path mismatch"

    print("KERNEL_OK")
</pallas_src>

<mosaic_0001>
module attributes {stable_mosaic.version = 11 : i64} {
  func.func @_resblock_kernel(%arg0: i32, %arg1: memref<1x4x256xf32, #tpu.memory_space<vmem>>, %arg2: memref<3x4x12xf32, #tpu.memory_space<vmem>>, %arg3: memref<3x4x12xf32, #tpu.memory_space<vmem>>, %arg4: memref<1x4x256xf32, #tpu.memory_space<vmem>>) attributes {dimension_semantics = [#tpu.dimension_semantics<parallel>], iteration_bounds = array<i64: 2>, scalar_prefetch = 0 : i64, scratch_operands = 0 : i64, tpu.core_type = #tpu.core_type<tc>, window_params = [{transform_indices = @transform_0, window_bounds = array<i64: 1, 4, 256>}, {pipeline_mode = #tpu.pipeline_mode<synchronous>, transform_indices = @transform_1, window_bounds = array<i64: 3, 4, 12>}, {pipeline_mode = #tpu.pipeline_mode<synchronous>, transform_indices = @transform_2, window_bounds = array<i64: 3, 4, 12>}, {transform_indices = @transform_3, window_bounds = array<i64: 1, 4, 256>}]} {
    %c0 = arith.constant 0 : index
    %c0_0 = arith.constant 0 : index
    %c0_1 = arith.constant 0 : index
    %0 = vector.load %arg1[%c0, %c0_0, %c0_1] : memref<1x4x256xf32, #tpu.memory_space<vmem>>, vector<1x4x256xf32>
    %1 = vector.shape_cast %0 : vector<1x4x256xf32> to vector<4x256xf32>
    %2 = tpu.iota {dimensions = array<i32: 1>} : vector<4x256xi32>
    %c16_i32 = arith.constant 16 : i32
    %c0_i32 = arith.constant 0 : i32
    %3 = arith.cmpi eq, %c16_i32, %c0_i32 : i32
    %c1_i32 = arith.constant 1 : i32
    %4 = arith.select %3, %c1_i32, %c16_i32 : i32
    %5 = vector.broadcast %4 : i32 to vector<4x256xi32>
    %6 = arith.remsi %2, %5 : vector<4x256xi32>
    %c0_i32_2 = arith.constant 0 : i32
    %7 = vector.broadcast %c0_i32_2 : i32 to vector<4x256xi32>
    %8 = arith.cmpi ne, %6, %7 : vector<4x256xi32>
    %c0_i32_3 = arith.constant 0 : i32
    %9 = vector.broadcast %c0_i32_3 : i32 to vector<4x256xi32>
    %10 = arith.cmpi slt, %6, %9 : vector<4x256xi32>
    %c0_i32_4 = arith.constant 0 : i32
    %11 = arith.cmpi slt, %4, %c0_i32_4 : i32
    %12 = vector.broadcast %11 : i1 to vector<4x256xi1>
    %13 = vector.broadcast %12 : vector<4x256xi1> to vector<4x256xi1>
    %14 = arith.xori %10, %13 : vector<4x256xi1>
    %15 = arith.andi %14, %8 : vector<4x256xi1>
    %16 = vector.broadcast %4 : i32 to vector<4x256xi32>
    %17 = arith.addi %6, %16 : vector<4x256xi32>
    %18 = arith.select %15, %17, %6 : vector<4x256xi1>, vector<4x256xi32>
    %c0_i32_5 = arith.constant 0 : i32
    %19 = vector.broadcast %c0_i32_5 : i32 to vector<4x256xi32>
    %20 = arith.cmpi eq, %18, %19 : vector<4x256xi32>
    %c15_i32 = arith.constant 15 : i32
    %21 = vector.broadcast %c15_i32 : i32 to vector<4x256xi32>
    %22 = arith.cmpi eq, %18, %21 : vector<4x256xi32>
    %23 = vector.extract_strided_slice %1 {offsets = [0, 16], sizes = [4, 16], strides = [1, 1]} : vector<4x256xf32> to vector<4x16xf32>
    %24 = vector.extract_strided_slice %1 {offsets = [0, 0], sizes = [4, 240], strides = [1, 1]} : vector<4x256xf32> to vector<4x240xf32>
    %25 = tpu.concatenate %23, %24 in 1 : vector<4x16xf32>, vector<4x240xf32> -> vector<4x256xf32>
    %26 = vector.extract_strided_slice %1 {offsets = [0, 16], sizes = [4, 240], strides = [1, 1]} : vector<4x256xf32> to vector<4x240xf32>
    %27 = vector.extract_strided_slice %1 {offsets = [0, 224], sizes = [4, 16], strides = [1, 1]} : vector<4x256xf32> to vector<4x16xf32>
    %28 = tpu.concatenate %26, %27 in 1 : vector<4x240xf32>, vector<4x16xf32> -> vector<4x256xf32>
    %cst = arith.constant 0.000000e+00 : f32
    %29 = vector.broadcast %cst : f32 to vector<4x256xf32>
    %30 = vector.extract_strided_slice %25 {offsets = [0, 1], sizes = [4, 255], strides = [1, 1]} : vector<4x256xf32> to vector<4x255xf32>
    %31 = vector.extract_strided_slice %25 {offsets = [0, 0], sizes = [4, 1], strides = [1, 1]} : vector<4x256xf32> to vector<4x1xf32>
    %32 = tpu.concatenate %30, %31 in 1 : vector<4x255xf32>, vector<4x1xf32> -> vector<4x256xf32>
    %33 = vector.extract_strided_slice %25 {offsets = [0, 255], sizes = [4, 1], strides = [1, 1]} : vector<4x256xf32> to vector<4x1xf32>
    %34 = vector.extract_strided_slice %25 {offsets = [0, 0], sizes = [4, 255], strides = [1, 1]} : vector<4x256xf32> to vector<4x255xf32>
    %35 = tpu.concatenate %33, %34 in 1 : vector<4x1xf32>, vector<4x255xf32> -> vector<4x256xf32>
    %36 = arith.select %20, %32, %35 : vector<4x256xi1>, vector<4x256xf32>
    %37 = arith.select %22, %35, %32 : vector<4x256xi1>, vector<4x256xf32>
    %38 = tpu.concatenate %36, %25, %37 in 0 : vector<4x256xf32>, vector<4x256xf32>, vector<4x256xf32> -> vector<12x256xf32>
    %c0_6 = arith.constant 0 : index
    %c0_7 = arith.constant 0 : index
    %c0_8 = arith.constant 0 : index
    %39 = vector.load %arg2[%c0_6, %c0_7, %c0_8] : memref<3x4x12xf32, #tpu.memory_space<vmem>>, vector<1x4x12xf32>
    %40 = vector.shape_cast %39 : vector<1x4x12xf32> to vector<4x12xf32>
    %cst_9 = arith.constant dense<0.000000e+00> : vector<4x256xf32>
    %41 = tpu.matmul %40, %38, %cst_9 {dimension_numbers = #tpu.dot_dimension_numbers<[1], [0], [0], [1], [0, 0, 1, 1], [], []>} : vector<4x12xf32>, vector<12x256xf32>, vector<4x256xf32> -> vector<4x256xf32>
    %42 = arith.addf %29, %41 : vector<4x256xf32>
    %43 = vector.extract_strided_slice %1 {offsets = [0, 1], sizes = [4, 255], strides = [1, 1]} : vector<4x256xf32> to vector<4x255xf32>
    %44 = vector.extract_strided_slice %1 {offsets = [0, 0], sizes = [4, 1], strides = [1, 1]} : vector<4x256xf32> to vector<4x1xf32>
    %45 = tpu.concatenate %43, %44 in 1 : vector<4x255xf32>, vector<4x1xf32> -> vector<4x256xf32>
    %46 = vector.extract_strided_slice %1 {offsets = [0, 255], sizes = [4, 1], strides = [1, 1]} : vector<4x256xf32> to vector<4x1xf32>
    %47 = vector.extract_strided_slice %1 {offsets = [0, 0], sizes = [4, 255], strides = [1, 1]} : vector<4x256xf32> to vector<4x255xf32>
    %48 = tpu.concatenate %46, %47 in 1 : vector<4x1xf32>, vector<4x255xf32> -> vector<4x256xf32>
    %49 = arith.select %20, %45, %48 : vector<4x256xi1>, vector<4x256xf32>
    %50 = arith.select %22, %48, %45 : vector<4x256xi1>, vector<4x256xf32>
    %51 = tpu.concatenate %49, %1, %50 in 0 : vector<4x256xf32>, vector<4x256xf32>, vector<4x256xf32> -> vector<12x256xf32>
    %c1 = arith.constant 1 : index
    %c0_10 = arith.constant 0 : index
    %c0_11 = arith.constant 0 : index
    %52 = vector.load %arg2[%c1, %c0_10, %c0_11] : memref<3x4x12xf32, #tpu.memory_space<vmem>>, vector<1x4x12xf32>
    %53 = vector.shape_cast %52 : vector<1x4x12xf32> to vector<4x12xf32>
    %cst_12 = arith.constant dense<0.000000e+00> : vector<4x256xf32>
    %54 = tpu.matmul %53, %51, %cst_12 {dimension_numbers = #tpu.dot_dimension_numbers<[1], [0], [0], [1], [0, 0, 1, 1], [], []>} : vector<4x12xf32>, vector<12x256xf32>, vector<4x256xf32> -> vector<4x256xf32>
    %55 = arith.addf %42, %54 : vector<4x256xf32>
    %56 = vector.extract_strided_slice %28 {offsets = [0, 1], sizes = [4, 255], strides = [1, 1]} : vector<4x256xf32> to vector<4x255xf32>
    %57 = vector.extract_strided_slice %28 {offsets = [0, 0], sizes = [4, 1], strides = [1, 1]} : vector<4x256xf32> to vector<4x1xf32>
    %58 = tpu.concatenate %56, %57 in 1 : vector<4x255xf32>, vector<4x1xf32> -> vector<4x256xf32>
    %59 = vector.extract_strided_slice %28 {offsets = [0, 255], sizes = [4, 1], strides = [1, 1]} : vector<4x256xf32> to vector<4x1xf32>
    %60 = vector.extract_strided_slice %28 {offsets = [0, 0], sizes = [4, 255], strides = [1, 1]} : vector<4x256xf32> to vector<4x255xf32>
    %61 = tpu.concatenate %59, %60 in 1 : vector<4x1xf32>, vector<4x255xf32> -> vector<4x256xf32>
    %62 = arith.select %20, %58, %61 : vector<4x256xi1>, vector<4x256xf32>
    %63 = arith.select %22, %61, %58 : vector<4x256xi1>, vector<4x256xf32>
    %64 = tpu.concatenate %62, %28, %63 in 0 : vector<4x256xf32>, vector<4x256xf32>, vector<4x256xf32> -> vector<12x256xf32>
    %c2 = arith.constant 2 : index
    %c0_13 = arith.constant 0 : index
    %c0_14 = arith.constant 0 : index
    %65 = vector.load %arg2[%c2, %c0_13, %c0_14] : memref<3x4x12xf32, #tpu.memory_space<vmem>>, vector<1x4x12xf32>
    %66 = vector.shape_cast %65 : vector<1x4x12xf32> to vector<4x12xf32>
    %cst_15 = arith.constant dense<0.000000e+00> : vector<4x256xf32>
    %67 = tpu.matmul %66, %64, %cst_15 {dimension_numbers = #tpu.dot_dimension_numbers<[1], [0], [0], [1], [0, 0, 1, 1], [], []>} : vector<4x12xf32>, vector<12x256xf32>, vector<4x256xf32> -> vector<4x256xf32>
    %68 = arith.addf %55, %67 : vector<4x256xf32>
    %cst_16 = arith.constant dense<0.000000e+00> : vector<4xf32>
    %69 = vector.multi_reduction <add>, %68, %cst_16 [1] : vector<4x256xf32> to vector<4xf32>
    %70 = vector.shape_cast %69 : vector<4xf32> to vector<4x1xf32>
    %cst_17 = arith.constant 3.906250e-03 : f32
    %71 = vector.broadcast %cst_17 : f32 to vector<4x1xf32>
    %72 = arith.mulf %70, %71 : vector<4x1xf32>
    %73 = vector.broadcast %72 : vector<4x1xf32> to vector<4x256xf32>
    %74 = arith.subf %68, %73 : vector<4x256xf32>
    %75 = arith.mulf %74, %74 : vector<4x256xf32>
    %cst_18 = arith.constant dense<0.000000e+00> : vector<4xf32>
    %76 = vector.multi_reduction <add>, %75, %cst_18 [1] : vector<4x256xf32> to vector<4xf32>
    %77 = vector.shape_cast %76 : vector<4xf32> to vector<4x1xf32>
    %cst_19 = arith.constant 3.906250e-03 : f32
    %78 = vector.broadcast %cst_19 : f32 to vector<4x1xf32>
    %79 = arith.mulf %77, %78 : vector<4x1xf32>
    %cst_20 = arith.constant 9.99999974E-6 : f32
    %80 = vector.broadcast %cst_20 : f32 to vector<4x1xf32>
    %81 = arith.addf %79, %80 : vector<4x1xf32>
    %82 = math.rsqrt %81 : vector<4x1xf32>
    %83 = vector.broadcast %82 : vector<4x1xf32> to vector<4x256xf32>
    %84 = arith.mulf %74, %83 : vector<4x256xf32>
    %cst_21 = arith.constant 0.000000e+00 : f32
    %85 = vector.broadcast %cst_21 : f32 to vector<4x256xf32>
    %86 = arith.maximumf %84, %85 : vector<4x256xf32>
    %87 = vector.extract_strided_slice %86 {offsets = [0, 16], sizes = [4, 16], strides = [1, 1]} : vector<4x256xf32> to vector<4x16xf32>
    %88 = vector.extract_strided_slice %86 {offsets = [0, 0], sizes = [4, 240], strides = [1, 1]} : vector<4x256xf32> to vector<4x240xf32>
    %89 = tpu.concatenate %87, %88 in 1 : vector<4x16xf32>, vector<4x240xf32> -> vector<4x256xf32>
    %90 = vector.extract_strided_slice %86 {offsets = [0, 16], sizes = [4, 240], strides = [1, 1]} : vector<4x256xf32> to vector<4x240xf32>
    %91 = vector.extract_strided_slice %86 {offsets = [0, 224], sizes = [4, 16], strides = [1, 1]} : vector<4x256xf32> to vector<4x16xf32>
    %92 = tpu.concatenate %90, %91 in 1 : vector<4x240xf32>, vector<4x16xf32> -> vector<4x256xf32>
    %cst_22 = arith.constant 0.000000e+00 : f32
    %93 = vector.broadcast %cst_22 : f32 to vector<4x256xf32>
    %94 = vector.extract_strided_slice %89 {offsets = [0, 1], sizes = [4, 255], strides = [1, 1]} : vector<4x256xf32> to vector<4x255xf32>
    %95 = vector.extract_strided_slice %89 {offsets = [0, 0], sizes = [4, 1], strides = [1, 1]} : vector<4x256xf32> to vector<4x1xf32>
    %96 = tpu.concatenate %94, %95 in 1 : vector<4x255xf32>, vector<4x1xf32> -> vector<4x256xf32>
    %97 = vector.extract_strided_slice %89 {offsets = [0, 255], sizes = [4, 1], strides = [1, 1]} : vector<4x256xf32> to vector<4x1xf32>
    %98 = vector.extract_strided_slice %89 {offsets = [0, 0], sizes = [4, 255], strides = [1, 1]} : vector<4x256xf32> to vector<4x255xf32>
    %99 = tpu.concatenate %97, %98 in 1 : vector<4x1xf32>, vector<4x255xf32> -> vector<4x256xf32>
    %100 = arith.select %20, %96, %99 : vector<4x256xi1>, vector<4x256xf32>
    %101 = arith.select %22, %99, %96 : vector<4x256xi1>, vector<4x256xf32>
    %102 = tpu.concatenate %100, %89, %101 in 0 : vector<4x256xf32>, vector<4x256xf32>, vector<4x256xf32> -> vector<12x256xf32>
    %c0_23 = arith.constant 0 : index
    %c0_24 = arith.constant 0 : index
    %c0_25 = arith.constant 0 : index
    %103 = vector.load %arg3[%c0_23, %c0_24, %c0_25] : memref<3x4x12xf32, #tpu.memory_space<vmem>>, vector<1x4x12xf32>
    %104 = vector.shape_cast %103 : vector<1x4x12xf32> to vector<4x12xf32>
    %cst_26 = arith.constant dense<0.000000e+00> : vector<4x256xf32>
    %105 = tpu.matmul %104, %102, %cst_26 {dimension_numbers = #tpu.dot_dimension_numbers<[1], [0], [0], [1], [0, 0, 1, 1], [], []>} : vector<4x12xf32>, vector<12x256xf32>, vector<4x256xf32> -> vector<4x256xf32>
    %106 = arith.addf %93, %105 : vector<4x256xf32>
    %107 = vector.extract_strided_slice %86 {offsets = [0, 1], sizes = [4, 255], strides = [1, 1]} : vector<4x256xf32> to vector<4x255xf32>
    %108 = vector.extract_strided_slice %86 {offsets = [0, 0], sizes = [4, 1], strides = [1, 1]} : vector<4x256xf32> to vector<4x1xf32>
    %109 = tpu.concatenate %107, %108 in 1 : vector<4x255xf32>, vector<4x1xf32> -> vector<4x256xf32>
    %110 = vector.extract_strided_slice %86 {offsets = [0, 255], sizes = [4, 1], strides = [1, 1]} : vector<4x256xf32> to vector<4x1xf32>
    %111 = vector.extract_strided_slice %86 {offsets = [0, 0], sizes = [4, 255], strides = [1, 1]} : vector<4x256xf32> to vector<4x255xf32>
    %112 = tpu.concatenate %110, %111 in 1 : vector<4x1xf32>, vector<4x255xf32> -> vector<4x256xf32>
    %113 = arith.select %20, %109, %112 : vector<4x256xi1>, vector<4x256xf32>
    %114 = arith.select %22, %112, %109 : vector<4x256xi1>, vector<4x256xf32>
    %115 = tpu.concatenate %113, %86, %114 in 0 : vector<4x256xf32>, vector<4x256xf32>, vector<4x256xf32> -> vector<12x256xf32>
    %c1_27 = arith.constant 1 : index
    %c0_28 = arith.constant 0 : index
    %c0_29 = arith.constant 0 : index
    %116 = vector.load %arg3[%c1_27, %c0_28, %c0_29] : memref<3x4x12xf32, #tpu.memory_space<vmem>>, vector<1x4x12xf32>
    %117 = vector.shape_cast %116 : vector<1x4x12xf32> to vector<4x12xf32>
    %cst_30 = arith.constant dense<0.000000e+00> : vector<4x256xf32>
    %118 = tpu.matmul %117, %115, %cst_30 {dimension_numbers = #tpu.dot_dimension_numbers<[1], [0], [0], [1], [0, 0, 1, 1], [], []>} : vector<4x12xf32>, vector<12x256xf32>, vector<4x256xf32> -> vector<4x256xf32>
    %119 = arith.addf %106, %118 : vector<4x256xf32>
    %120 = vector.extract_strided_slice %92 {offsets = [0, 1], sizes = [4, 255], strides = [1, 1]} : vector<4x256xf32> to vector<4x255xf32>
    %121 = vector.extract_strided_slice %92 {offsets = [0, 0], sizes = [4, 1], strides = [1, 1]} : vector<4x256xf32> to vector<4x1xf32>
    %122 = tpu.concatenate %120, %121 in 1 : vector<4x255xf32>, vector<4x1xf32> -> vector<4x256xf32>
    %123 = vector.extract_strided_slice %92 {offsets = [0, 255], sizes = [4, 1], strides = [1, 1]} : vector<4x256xf32> to vector<4x1xf32>
    %124 = vector.extract_strided_slice %92 {offsets = [0, 0], sizes = [4, 255], strides = [1, 1]} : vector<4x256xf32> to vector<4x255xf32>
    %125 = tpu.concatenate %123, %124 in 1 : vector<4x1xf32>, vector<4x255xf32> -> vector<4x256xf32>
    %126 = arith.select %20, %122, %125 : vector<4x256xi1>, vector<4x256xf32>
    %127 = arith.select %22, %125, %122 : vector<4x256xi1>, vector<4x256xf32>
    %128 = tpu.concatenate %126, %92, %127 in 0 : vector<4x256xf32>, vector<4x256xf32>, vector<4x256xf32> -> vector<12x256xf32>
    %c2_31 = arith.constant 2 : index
    %c0_32 = arith.constant 0 : index
    %c0_33 = arith.constant 0 : index
    %129 = vector.load %arg3[%c2_31, %c0_32, %c0_33] : memref<3x4x12xf32, #tpu.memory_space<vmem>>, vector<1x4x12xf32>
    %130 = vector.shape_cast %129 : vector<1x4x12xf32> to vector<4x12xf32>
    %cst_34 = arith.constant dense<0.000000e+00> : vector<4x256xf32>
    %131 = tpu.matmul %130, %128, %cst_34 {dimension_numbers = #tpu.dot_dimension_numbers<[1], [0], [0], [1], [0, 0, 1, 1], [], []>} : vector<4x12xf32>, vector<12x256xf32>, vector<4x256xf32> -> vector<4x256xf32>
    %132 = arith.addf %119, %131 : vector<4x256xf32>
    %cst_35 = arith.constant dense<0.000000e+00> : vector<4xf32>
    %133 = vector.multi_reduction <add>, %132, %cst_35 [1] : vector<4x256xf32> to vector<4xf32>
    %134 = vector.shape_cast %133 : vector<4xf32> to vector<4x1xf32>
    %cst_36 = arith.constant 3.906250e-03 : f32
    %135 = vector.broadcast %cst_36 : f32 to vector<4x1xf32>
    %136 = arith.mulf %134, %135 : vector<4x1xf32>
    %137 = vector.broadcast %136 : vector<4x1xf32> to vector<4x256xf32>
    %138 = arith.subf %132, %137 : vector<4x256xf32>
    %139 = arith.mulf %138, %138 : vector<4x256xf32>
    %cst_37 = arith.constant dense<0.000000e+00> : vector<4xf32>
    %140 = vector.multi_reduction <add>, %139, %cst_37 [1] : vector<4x256xf32> to vector<4xf32>
    %141 = vector.shape_cast %140 : vector<4xf32> to vector<4x1xf32>
    %cst_38 = arith.constant 3.906250e-03 : f32
    %142 = vector.broadcast %cst_38 : f32 to vector<4x1xf32>
    %143 = arith.mulf %141, %142 : vector<4x1xf32>
    %cst_39 = arith.constant 9.99999974E-6 : f32
    %144 = vector.broadcast %cst_39 : f32 to vector<4x1xf32>
    %145 = arith.addf %143, %144 : vector<4x1xf32>
    %146 = math.rsqrt %145 : vector<4x1xf32>
    %147 = vector.broadcast %146 : vector<4x1xf32> to vector<4x256xf32>
    %148 = arith.mulf %138, %147 : vector<4x256xf32>
    %149 = arith.addf %148, %1 : vector<4x256xf32>
    %c0_40 = arith.constant 0 : index
    %c0_41 = arith.constant 0 : index
    %c0_42 = arith.constant 0 : index
    %150 = vector.load %arg4[%c0_40, %c0_41, %c0_42] : memref<1x4x256xf32, #tpu.memory_space<vmem>>, vector<1x4x256xf32>
    %151 = vector.shape_cast %150 : vector<1x4x256xf32> to vector<4x256xf32>
    %152 = vector.shape_cast %149 : vector<4x256xf32> to vector<1x4x256xf32>
    tpu.vector_store %arg4[%c0_40, %c0_41, %c0_42], %152 {strides = array<i32>} : memref<1x4x256xf32, #tpu.memory_space<vmem>>, vector<1x4x256xf32>,
    return
  }
  func.func @transform_0(%arg0: i32) -> (i32, i32, i32) {
    %c0_i32 = arith.constant 0 : i32
    %c0_i32_0 = arith.constant 0 : i32
    %c0_i32_1 = arith.constant 0 : i32
    return %arg0, %c0_i32, %c0_i32_0 : i32, i32, i32
  }
  func.func @transform_1(%arg0: i32) -> (i32, i32, i32) {
    %c0_i32 = arith.constant 0 : i32
    %c0_i32_0 = arith.constant 0 : i32
    %c0_i32_1 = arith.constant 0 : i32
    %c0_i32_2 = arith.constant 0 : i32
    return %c0_i32, %c0_i32_0, %c0_i32_1 : i32, i32, i32
  }
  func.func @transform_2(%arg0: i32) -> (i32, i32, i32) {
    %c0_i32 = arith.constant 0 : i32
    %c0_i32_0 = arith.constant 0 : i32
    %c0_i32_1 = arith.constant 0 : i32
    %c0_i32_2 = arith.constant 0 : i32
    return %c0_i32, %c0_i32_0, %c0_i32_1 : i32, i32, i32
  }
  func.func @transform_3(%arg0: i32) -> (i32, i32, i32) {
    %c0_i32 = arith.constant 0 : i32
    %c0_i32_0 = arith.constant 0 : i32
    %c0_i32_1 = arith.constant 0 : i32
    return %arg0, %c0_i32, %c0_i32_0 : i32, i32, i32
  }
}

</mosaic_0001>

<llo_original>
// kernel: tpu_custom_call.1
$region0: #{tpu_custom_call.1}
  #allocation0 [shape = 'u32[]', space=smem, size = 0x4, offset = 0x4, fixed_abs, tag = 'smem constant byte address 0x4 - core index']
  #allocation1 [shape = 'u32[144,128]{1,0:T(1,128)}', space=vmem, size = 0x12000, scoped, tag = 'internal scratch']
  %s0 = inlined_call_operand.hbm [shape: f32[2,4,256], index: 0, kind: input, shape index: {}]
  %s1 = inlined_call_operand.hbm [shape: f32[3,4,12], index: 1, kind: input, shape index: {}]
  %s2 = inlined_call_operand.hbm [shape: f32[3,4,12], index: 2, kind: input, shape index: {}]
  %s3 = inlined_call_operand.hbm [shape: f32[2,4,256], index: 3, kind: output, shape index: {}]
  %s4 = sld [smem:[#allocation0]]
  $region57: #{tpu_custom_call.1} parent=0
    _
  %s6 = ssub.s32 1, %s4
  %s7 = scalar_select 0, %s6, %s4
  $region1: #{tpu_custom_call.1} parent=0
    #allocation2 [shape = 'u8[8192]{0}', space=vmem, size = 0x2000, scoped, tag = 'input window, operand 0']
    #allocation3 [shape = 's32[2]{0}', space=sflag, size = 0x8, scoped, tag = 'scoped memory for tpu_custom_call.1']
    #allocation4 [shape = 's32[2]{0}', space=sflag, size = 0x8, scoped, tag = 'scoped memory for tpu_custom_call.1']
    #allocation5 [shape = 'u8[6144]{0}', space=vmem, size = 0x1800, scoped, tag = 'input window, operand 1, single buffered']
    #allocation6 [shape = 's32[1]{0}', space=sflag, size = 0x4, scoped, tag = 'scoped memory for tpu_custom_call.1']
    #allocation7 [shape = 'u8[6144]{0}', space=vmem, size = 0x1800, scoped, tag = 'input window, operand 2, single buffered']
    #allocation8 [shape = 'u8[8192]{0}', space=vmem, size = 0x2000, scoped, tag = 'output window, operand 0']
    %8 = vsyncpa [#allocation3], 0
    %s9 = scalar_lea.sflag [#allocation3], 1
    %10 = vsyncpa %s9, 0
    %11 = vsyncpa [#allocation6], 0
    %12 = vsyncpa [#allocation4], 0
    %s13 = scalar_lea.sflag [#allocation4], 1
    %14 = vsyncpa %s13, 0
    loop: start=0, step=1, limit=4
    $region2: #{tpu_custom_call.1} parent=1 // loop_pre_header
      _
    $region3: #{tpu_custom_call.1} parent=1 // loop_header
      %s16 = sphi 0, %s20
      %p17 = scmp.ge.s32.totalorder %s16, 4
      %s26 = sphi 0, %s28
      %s29 = sphi 0, %s26
      %s30 = sphi 0, %s29
      %s46 = sphi 0, %s30
      %s50 = sphi 0, %s50
      %s52 = sphi 0, %s50
      %s53 = sphi 0, %s52
      %s67 = sphi 0, %s53
      %s71 = sphi 0, %s71
      %s73 = sphi 0, %s71
      %s74 = sphi 0, %s73
      %s88 = sphi 0, %s74
      %s94 = sphi 0, %s96
      %s97 = sphi 0, %s94
      %s98 = sphi 0, %s97
      %s114 = sphi 0, %s98
    $region4: #{tpu_custom_call.1} parent=1 // loop_header_branch
      %19 = sbr.rel (%p17) target = $region8
    $region5: #{tpu_custom_call.1} parent=1 // loop_body
      %s21 = ssub.s32 %s16, 1
      %s22 = ssub.s32 %s16, 2
      %s23 = sadd.s32 %s16, 1
      %s24 = ssub.s32 %s16, %s23
      %p25 = scmp.eq.s32.totalorder %s24, 0
      %s27 = sadd.s32 %s26, 1
      %s28 = scalar_select %p25, %s26, %s27
      %p31 = pneg %p25
      %p32 = scmp.eq.s32.totalorder %s16, 1
      %p33 = por %p31, %p32
      %p34 = scmp.ne.s32.totalorder %s26, %s29
      %p35 = scmp.eq.s32.totalorder %s16, 0
      %p36 = por %p34, %p35
      %p37 = scmp.ne.s32.totalorder %s26, %s29
      %p38 = scmp.eq.s32.totalorder %s21, 1
      %p39 = por %p37, %p38
      %p40 = scmp.ne.s32.totalorder %s29, %s30
      %p41 = scmp.eq.s32.totalorder %s21, 0
      %p42 = por %p40, %p41
      %p43 = scmp.ne.s32.totalorder %s29, %s30
      %p44 = scmp.eq.s32.totalorder %s22, 1
      %p45 = por %p43, %p44
      %p47 = scmp.ne.s32.totalorder %s30, %s46
      %p48 = scmp.eq.s32.totalorder %s22, 0
      %p49 = por %p47, %p48
      %s51 = sadd.s32 %s50, 1
      %p54 = scmp.eq.s32.totalorder %s16, 1
      %p55 = scmp.ne.s32.totalorder %s50, %s52
      %p56 = scmp.eq.s32.totalorder %s16, 0
      %p57 = por %p55, %p56
      %p58 = scmp.ne.s32.totalorder %s50, %s52
      %p59 = scmp.eq.s32.totalorder %s21, 1
      %p60 = por %p58, %p59
      %p61 = scmp.ne.s32.totalorder %s52, %s53
      %p62 = scmp.eq.s32.totalorder %s21, 0
      %p63 = por %p61, %p62
      %p64 = scmp.ne.s32.totalorder %s52, %s53
      %p65 = scmp.eq.s32.totalorder %s22, 1
      %p66 = por %p64, %p65
      %p68 = scmp.ne.s32.totalorder %s53, %s67
      %p69 = scmp.eq.s32.totalorder %s22, 0
      %p70 = por %p68, %p69
      %s72 = sadd.s32 %s71, 1
      %p75 = scmp.eq.s32.totalorder %s16, 1
      %p76 = scmp.ne.s32.totalorder %s71, %s73
      %p77 = scmp.eq.s32.totalorder %s16, 0
      %p78 = por %p76, %p77
      %p79 = scmp.ne.s32.totalorder %s71, %s73
      %p80 = scmp.eq.s32.totalorder %s21, 1
      %p81 = por %p79, %p80
      %p82 = scmp.ne.s32.totalorder %s73, %s74
      %p83 = scmp.eq.s32.totalorder %s21, 0
      %p84 = por %p82, %p83
      %p85 = scmp.ne.s32.totalorder %s73, %s74
      %p86 = scmp.eq.s32.totalorder %s22, 1
      %p87 = por %p85, %p86
      %p89 = scmp.ne.s32.totalorder %s74, %s88
      %p90 = scmp.eq.s32.totalorder %s22, 0
      %p91 = por %p89, %p90
      %s92 = ssub.s32 %s16, %s23
      %p93 = scmp.eq.s32.totalorder %s92, 0
      %s95 = sadd.s32 %s94, 1
      %s96 = scalar_select %p93, %s94, %s95
      %p99 = pneg %p93
      %p100 = scmp.eq.s32.totalorder %s16, 1
      %p101 = por %p99, %p100
      %p102 = scmp.ne.s32.totalorder %s94, %s97
      %p103 = scmp.eq.s32.totalorder %s16, 0
      %p104 = por %p102, %p103
      %p105 = scmp.ne.s32.totalorder %s94, %s97
      %p106 = scmp.eq.s32.totalorder %s21, 1
      %p107 = por %p105, %p106
      %p108 = scmp.ne.s32.totalorder %s97, %s98
      %p109 = scmp.eq.s32.totalorder %s21, 0
      %p110 = por %p108, %p109
      %p111 = scmp.ne.s32.totalorder %s97, %s98
      %p112 = scmp.eq.s32.totalorder %s22, 1
      %p113 = por %p111, %p112
      %p115 = scmp.ne.s32.totalorder %s98, %s114
      %p116 = scmp.eq.s32.totalorder %s22, 0
      %p117 = por %p115, %p116
      %p118 = scmp.le.s32.totalorder 1, %s16
      %p119 = scmp.lt.s32.totalorder %s16, 3
      %p120 = pnand %p118, %p119
      %p121 = pneg %p120
      // Predicated region
      $region9: #{tpu_custom_call.1} parent=5 // pred_check
        _
      $region10: #{tpu_custom_call.1} parent=5 // pred_check_branch
        %123 = sbr.rel (%p120) target = $region12
      $region11: #{tpu_custom_call.1} parent=5 // pred_region
        %s124 = ssub.s32 %s16, 1
        // Predicated region
        $region13: #{tpu_custom_call.1} parent=11 // pred_check
          %p125 = pneg %p63
        $region14: #{tpu_custom_call.1} parent=11 // pred_check_branch
          %127 = sbr.rel (%p125) target = $region16
        $region15: #{tpu_custom_call.1} parent=11 // pred_region
          %s129 = ssub.s32 192, 192
          %130 = vsyncadd [#allocation6], %s129
          %s131 = sshll.u32 [#allocation5], 4
          %s132 = int_to_ptr.vmem [resolvable:$true] %s131
          %137 = dma.hbm_to_vmem [thread:$0]  %s1, 192, %s132, [#allocation6], 64, 64, 4
        $region16: #{tpu_custom_call.1} parent=11 // pred_fallthru
          _
        // Predicated region
        $region17: #{tpu_custom_call.1} parent=11 // pred_check
          %p138 = pneg %p84
        $region18: #{tpu_custom_call.1} parent=11 // pred_check_branch
          %140 = sbr.rel (%p138) target = $region20
        $region19: #{tpu_custom_call.1} parent=11 // pred_region
          %s142 = ssub.s32 192, 192
          %143 = vsyncadd [#allocation6], %s142
          %s144 = sshll.u32 [#allocation7], 4
          %s145 = int_to_ptr.vmem [resolvable:$true] %s144
          %150 = dma.hbm_to_vmem [thread:$0]  %s2, 192, %s145, [#allocation6], 64, 64, 4
        $region20: #{tpu_custom_call.1} parent=11 // pred_fallthru
          _
      $region12: #{tpu_custom_call.1} parent=5 // pred_fallthru
        _
      %p151 = scmp.lt.s32.totalorder %s16, 2
      // Predicated region
      $region21: #{tpu_custom_call.1} parent=5 // pred_check
        %p152 = pneg %p151
      $region22: #{tpu_custom_call.1} parent=5 // pred_check_branch
        %154 = sbr.rel (%p152) target = $region24
      $region23: #{tpu_custom_call.1} parent=5 // pred_region
        // Predicated region
        $region25: #{tpu_custom_call.1} parent=23 // pred_check
          %p155 = pneg %p36
        $region26: #{tpu_custom_call.1} parent=23 // pred_check_branch
          %157 = sbr.rel (%p155) target = $region28
        $region27: #{tpu_custom_call.1} parent=23 // pred_region
          %s158 = sand.u32 %s26, 1
          %s159 = scalar_lea.sflag [#allocation3], %s158
          %s160 = sand.u32 %s26, 1
          %s161 = smul.addr %s160, 8
          %s162 = scalar_lea.vmem [#allocation2], %s161
          %s164 = ssub.s32 128, 128
          %165 = vsyncadd %s159, %s164
          %s166 = smul.addr %s16, 2
          %s167 = smul.addr %s166, 64
          %s168 = scalar_lea.hbm %s0, %s167
          %s170 = sshll.u32 %s162, 4
          %s171 = int_to_ptr.vmem [resolvable:$true] %s170
          %173 = dma.hbm_to_vmem [thread:$0]  %s168, 128, %s171, %s159
        $region28: #{tpu_custom_call.1} parent=23 // pred_fallthru
          _
      $region24: #{tpu_custom_call.1} parent=5 // pred_fallthru
        _
      %p174 = scmp.le.s32.totalorder 1, %s16
      %p175 = scmp.lt.s32.totalorder %s16, 3
      %p176 = pnand %p174, %p175
      %p177 = pneg %p176
      // Predicated region
      $region29: #{tpu_custom_call.1} parent=5 // pred_check
        _
      $region30: #{tpu_custom_call.1} parent=5 // pred_check_branch
        %179 = sbr.rel (%p176) target = $region32
      $region31: #{tpu_custom_call.1} parent=5 // pred_region
        %s180 = ssub.s32 %s16, 1
        %s181 = sand.u32 %s29, 1
        %s182 = scalar_lea.sflag [#allocation3], %s181
        %s183 = sand.u32 %s29, 1
        %s184 = smul.addr %s183, 8
        %s185 = scalar_lea.vmem [#allocation2], %s184
        // Predicated region
        $region33: #{tpu_custom_call.1} parent=31 // pred_check
          %p186 = pneg %p42
        $region34: #{tpu_custom_call.1} parent=31 // pred_check_branch
          %188 = sbr.rel (%p186) target = $region36
        $region35: #{tpu_custom_call.1} parent=31 // pred_region
          %189 = dma.done %s182, 128
        $region36: #{tpu_custom_call.1} parent=31 // pred_fallthru
          _
        // Predicated region
        $region37: #{tpu_custom_call.1} parent=31 // pred_check
          %p190 = pneg %p63
        $region38: #{tpu_custom_call.1} parent=31 // pred_check_branch
          %192 = sbr.rel (%p190) target = $region40
        $region39: #{tpu_custom_call.1} parent=31 // pred_region
          %193 = dma.done [#allocation6], 192
        $region40: #{tpu_custom_call.1} parent=31 // pred_fallthru
          _
        // Predicated region
        $region41: #{tpu_custom_call.1} parent=31 // pred_check
          %p194 = pneg %p84
        $region42: #{tpu_custom_call.1} parent=31 // pred_check_branch
          %196 = sbr.rel (%p194) target = $region44
        $region43: #{tpu_custom_call.1} parent=31 // pred_region
          %197 = dma.done [#allocation6], 192
        $region44: #{tpu_custom_call.1} parent=31 // pred_fallthru
          _
        %s198 = sand.u32 %s29, 1
        %s199 = scalar_lea.sflag [#allocation3], %s198
        %s200 = sand.u32 %s29, 1
        %s201 = smul.addr %s200, 8
        %s202 = scalar_lea.vmem [#allocation2], %s201
        %p203 = pneg %p42
        %p204 = pneg %p39
        %p205 = pneg %p63
        %p206 = pneg %p60
        %p207 = pneg %p84
        %p208 = pneg %p81
        %p209 = pneg %p110
        %p210 = pneg %p107
        %s211 = sand.u32 %s97, 1
        %s212 = scalar_lea.sflag [#allocation4], %s211
        %s213 = sand.u32 %s97, 1
        %s214 = smul.addr %s213, 8
        %s215 = scalar_lea.vmem [#allocation8], %s214
        %v216 = vld [vmem:[%s185] sm:$0xff]
        %v217 = vlaneseq
        %v218 = vand.u32 %v217, 127
        %v219 = vadd.s32 %v218, 128
        %vm220 = vcmp.lt.s32.totalorder %v218, 0
        %v221 = vsub.s32 0, %v218
        %v222 = vsel %vm220, %v221, %v218
        %v223 = vshrl.u32 %v222, 4
        %v224 = vand.u32 %v222, 15
        %v225 = vsub.s32 0, %v224
        %v226 = vsel %vm220, %v225, %v224
        %vm227 = vcmp.lt.s32.totalorder %v219, 0
        %v228 = vsub.s32 0, %v219
        %v229 = vsel %vm227, %v228, %v219
        %v230 = vshrl.u32 %v229, 4
        %v231 = vand.u32 %v229, 15
        %v232 = vsub.s32 0, %v231
        %v233 = vsel %vm227, %v232, %v231
        %vm234 = vcmp.ne.s32.totalorder %v226, 0
        %vm235 = vcmp.ne.s32.totalorder %v233, 0
        %vm236 = vcmp.lt.s32.totalorder %v226, 0
        %vm237 = vcmp.lt.s32.totalorder %v233, 0
        %vm238 = vmand %vm236, %vm234
        %vm239 = vmand %vm237, %vm235
        %v240 = vadd.s32 %v226, 16
        %v241 = vadd.s32 %v233, 16
        %v242 = vsel %vm238, %v240, %v226
        %v243 = vsel %vm239, %v241, %v233
        %vm244 = vcmp.eq.s32.totalorder %v242, 0
        %vm245 = vcmp.eq.s32.totalorder %v243, 0
        %vm246 = vcmp.eq.s32.totalorder %v242, 15
        %vm247 = vcmp.eq.s32.totalorder %v243, 15
        %249 = vrot.lane.b32.xlu0 %v216, 112
        %v250 = vpop.permute.xlu0 %249
        %v252 = vcombine.high %v216, %v216
        %253 = vrot.lane.b32.xlu0 %v216, 16
        %v254 = vpop.permute.xlu0 %253
        %255 = vrot.lane.b32.xlu0 %v252, 16
        %v256 = vpop.permute.xlu0 %255
        %vm257 = vcmask 130048
        %v258 = vsel %vm257, %v254, %v256
        %v260 = vsel %vm257, %v250, %v254
        %261 = vrot.lane.b32.xlu0 %v252, 112
        %v262 = vpop.permute.xlu0 %261
        %vm263 = vcmask 916480
        %v264 = vsel %vm263, %v250, %v262
        %v267 = vsel %vm263, %v262, %v256
        %269 = vrot.lane.b32.xlu0 %v260, 127
        %v270 = vpop.permute.xlu0 %269
        %271 = vrot.lane.b32.xlu0 %v258, 127
        %v272 = vpop.permute.xlu0 %271
        %vm273 = vcmask 1039360
        %v274 = vsel %vm273, %v270, %v272
        %v278 = vsel %vm273, %v272, %v270
        %279 = vrot.lane.b32.xlu0 %v258, 1
        %v280 = vpop.permute.xlu0 %279
        %282 = vrot.lane.b32.xlu0 %v260, 1
        %v283 = vpop.permute.xlu0 %282
        %vm284 = vcmask 7168
        %v285 = vsel %vm284, %v283, %v280
        %v288 = vsel %vm284, %v280, %v283
        %v289 = vsel %vm244, %v274, %v288
        %v290 = vsel %vm245, %v278, %v285
        %v291 = vsel %vm246, %v288, %v274
        %v292 = vsel %vm247, %v285, %v278
        %v293 = vrot.slane %v260, 4
        %v294 = vrot.slane %v258, 4
        %vm297 = vcmask 1043456
        %v298 = vsel %vm297, %v289, %v293
        %v299 = vsel %vm297, %v290, %v294
        %v300 = vld [vmem:[#allocation5] sm:$0xf]
        %301 = vrot.lane.b32.xlu0 %v216, 127
        %v302 = vpop.permute.xlu0 %301
        %303 = vrot.lane.b32.xlu0 %v252, 127
        %v304 = vpop.permute.xlu0 %303
        %v305 = vsel %vm273, %v302, %v304
        %v309 = vsel %vm273, %v304, %v302
        %310 = vrot.lane.b32.xlu0 %v252, 1
        %v311 = vpop.permute.xlu0 %310
        %313 = vrot.lane.b32.xlu0 %v216, 1
        %v314 = vpop.permute.xlu0 %313
        %v315 = vsel %vm284, %v314, %v311
        %v318 = vsel %vm284, %v311, %v314
        %v319 = vsel %vm244, %v305, %v318
        %v320 = vsel %vm245, %v309, %v315
        %v321 = vsel %vm246, %v318, %v305
        %v322 = vsel %vm247, %v315, %v309
        %v323 = vcombine.low %v216, %v216
        %v325 = vsel %vm297, %v319, %v323
        %v326 = vsel %vm297, %v320, %v216
        %s327 = scalar_lea.vmem [#allocation5], 4
        %v328 = vld [vmem:[%s327] sm:$0xf]
        %vm329 = vcmask 97280
        %v331 = vsel %vm329, %v328, 0
        %v334 = vsel %vm297, %v321, 0
        %v337 = vsel %vm297, %v322, 0
        %339 = vmatprep.subr.mxu0 %v326
        %340 = vmatpush1.msra.mxu0 %v325
        %341 = vmatprep.subr.mxu0 %v337
        %342 = vmatpush1.msra.mxu0 %v334
        %343 = vmatprep.subr.mxu0 0.0
        %344 = vmatpush1.msra.mxu0 0.0
        %345 = vmatprep.subr.mxu0 0.0
        %346 = vmatpush1.msra.mxu0 0.0
        %347 = vmatprep.subr.mxu0 0.0
        %348 = vmatpush1.msra.mxu0 0.0
        %349 = vmatprep.subr.mxu0 0.0
        %350 = vmatpush1.msra.mxu0 0.0
        %351 = vmatprep.subr.mxu0 0.0
        %352 = vmatpush1.msra.mxu0 0.0
        %353 = vmatprep.subr.mxu0 0.0
        %354 = vmatpush1.msra.mxu0 0.0
        %355 = vmatprep.subr.mxu0 0.0
        %356 = vmatpush1.msra.mxu0 0.0
        %357 = vmatprep.subr.mxu0 0.0
        %358 = vmatpush1.msra.mxu0 0.0
        %359 = vmatprep.subr.mxu0 0.0
        %360 = vmatpush1.msra.mxu0 0.0
        %361 = vmatprep.subr.mxu0 0.0
        %362 = vmatpush1.msra.mxu0 0.0
        %363 = vmatprep.subr.mxu0 0.0
        %364 = vmatpush1.msra.mxu0 0.0
        %365 = vmatprep.subr.mxu0 0.0
        %366 = vmatpush1.msra.mxu0 0.0
        %367 = vmatprep.subr.mxu0 0.0
        %368 = vmatpush1.msra.mxu0 0.0
        %369 = vmatprep.subr.mxu0 0.0
        %370 = vmatpush1.msra.mxu0 0.0
        %371 = vmatprep.subr.mxu0 0.0
        %372 = vmatpush1.msra.mxu0 0.0
        %373 = vmatprep.subr.mxu0 0.0
        %374 = vmatpush1.msra.mxu0 0.0
        %375 = vmatprep.subr.mxu0 0.0
        %376 = vmatpush1.msra.mxu0 0.0
        %377 = vmatprep.subr.mxu0 0.0
        %378 = vmatpush1.msra.mxu0 0.0
        %379 = vmatprep.subr.mxu0 0.0
        %380 = vmatpush1.msra.mxu0 0.0
        %381 = vmatprep.subr.mxu0 0.0
        %382 = vmatpush1.msra.mxu0 0.0
        %383 = vmatprep.subr.mxu0 0.0
        %384 = vmatpush1.msra.mxu0 0.0
        %385 = vmatprep.subr.mxu0 0.0
        %386 = vmatpush1.msra.mxu0 0.0
        %387 = vmatprep.subr.mxu0 0.0
        %388 = vmatpush1.msra.mxu0 0.0
        %389 = vmatprep.subr.mxu0 0.0
        %390 = vmatpush1.msra.mxu0 0.0
        %391 = vmatprep.subr.mxu0 0.0
        %392 = vmatpush1.msra.mxu0 0.0
        %393 = vmatprep.subr.mxu0 0.0
        %394 = vmatpush1.msra.mxu0 0.0
        %395 = vmatprep.subr.mxu0 0.0
        %396 = vmatpush1.msra.mxu0 0.0
        %397 = vmatprep.subr.mxu0 0.0
        %398 = vmatpush1.msra.mxu0 0.0
        %399 = vmatprep.subr.mxu0 0.0
        %400 = vmatpush1.msra.mxu0 0.0
        %401 = vmatprep.subr.mxu0 0.0
        %402 = vmatpush1.msra.mxu0 0.0
        %403 = vmatprep.mubr.f32.mxu0 0.0
        %404 = vmatmul.mubr.f32.gmra.mrb[0].mxu0 %v331
        %v405 = vpop.f32.mrb[0].mxu0
        %v406 = vadd.f32 0.0, %v405
        %v407 = vpop.f32.mrb[0].mxu0
        %v408 = vadd.f32 0.0, %v407
        %409 = vdwg.mxu0
        %v411 = vsel %vm329, %v300, 0
        %v414 = vsel %vm297, %v291, 0
        %v417 = vsel %vm297, %v292, 0
        %419 = vmatprep.subr.mxu0 %v299
        %420 = vmatpush1.msra.mxu0 %v298
        %421 = vmatprep.subr.mxu0 %v417
        %422 = vmatpush1.msra.mxu0 %v414
        %423 = vmatprep.subr.mxu0 0.0
        %424 = vmatpush1.msra.mxu0 0.0
        %425 = vmatprep.subr.mxu0 0.0
        %426 = vmatpush1.msra.mxu0 0.0
        %427 = vmatprep.subr.mxu0 0.0
        %428 = vmatpush1.msra.mxu0 0.0
        %429 = vmatprep.subr.mxu0 0.0
        %430 = vmatpush1.msra.mxu0 0.0
        %431 = vmatprep.subr.mxu0 0.0
        %432 = vmatpush1.msra.mxu0 0.0
        %433 = vmatprep.subr.mxu0 0.0
        %434 = vmatpush1.msra.mxu0 0.0
        %435 = vmatprep.subr.mxu0 0.0
        %436 = vmatpush1.msra.mxu0 0.0
        %437 = vmatprep.subr.mxu0 0.0
        %438 = vmatpush1.msra.mxu0 0.0
        %439 = vmatprep.subr.mxu0 0.0
        %440 = vmatpush1.msra.mxu0 0.0
        %441 = vmatprep.subr.mxu0 0.0
        %442 = vmatpush1.msra.mxu0 0.0
        %443 = vmatprep.subr.mxu0 0.0
        %444 = vmatpush1.msra.mxu0 0.0
        %445 = vmatprep.subr.mxu0 0.0
        %446 = vmatpush1.msra.mxu0 0.0
        %447 = vmatprep.subr.mxu0 0.0
        %448 = vmatpush1.msra.mxu0 0.0
        %449 = vmatprep.subr.mxu0 0.0
        %450 = vmatpush1.msra.mxu0 0.0
        %451 = vmatprep.subr.mxu0 0.0
        %452 = vmatpush1.msra.mxu0 0.0
        %453 = vmatprep.subr.mxu0 0.0
        %454 = vmatpush1.msra.mxu0 0.0
        %455 = vmatprep.subr.mxu0 0.0
        %456 = vmatpush1.msra.mxu0 0.0
        %457 = vmatprep.subr.mxu0 0.0
        %458 = vmatpush1.msra.mxu0 0.0
        %459 = vmatprep.subr.mxu0 0.0
        %460 = vmatpush1.msra.mxu0 0.0
        %461 = vmatprep.subr.mxu0 0.0
        %462 = vmatpush1.msra.mxu0 0.0
        %463 = vmatprep.subr.mxu0 0.0
        %464 = vmatpush1.msra.mxu0 0.0
        %465 = vmatprep.subr.mxu0 0.0
        %466 = vmatpush1.msra.mxu0 0.0
        %467 = vmatprep.subr.mxu0 0.0
        %468 = vmatpush1.msra.mxu0 0.0
        %469 = vmatprep.subr.mxu0 0.0
        %470 = vmatpush1.msra.mxu0 0.0
        %471 = vmatprep.subr.mxu0 0.0
        %472 = vmatpush1.msra.mxu0 0.0
        %473 = vmatprep.subr.mxu0 0.0
        %474 = vmatpush1.msra.mxu0 0.0
        %475 = vmatprep.subr.mxu0 0.0
        %476 = vmatpush1.msra.mxu0 0.0
        %477 = vmatprep.subr.mxu0 0.0
        %478 = vmatpush1.msra.mxu0 0.0
        %479 = vmatprep.subr.mxu0 0.0
        %480 = vmatpush1.msra.mxu0 0.0
        %481 = vmatprep.subr.mxu0 0.0
        %482 = vmatpush1.msra.mxu0 0.0
        %483 = vmatprep.mubr.f32.mxu0 0.0
        %484 = vmatmul.mubr.f32.gmra.mrb[0].mxu0 %v411
        %v485 = vpop.f32.mrb[0].mxu0
        %v486 = vadd.f32 %v406, %v485
        %v487 = vpop.f32.mrb[0].mxu0
        %v488 = vadd.f32 %v408, %v487
        %489 = vdwg.mxu0
        %491 = vrot.lane.b32.xlu0 %v264, 127
        %v492 = vpop.permute.xlu0 %491
        %493 = vrot.lane.b32.xlu0 %v267, 127
        %v494 = vpop.permute.xlu0 %493
        %v495 = vsel %vm273, %v492, %v494
        %v499 = vsel %vm273, %v494, %v492
        %500 = vrot.lane.b32.xlu0 %v267, 1
        %v501 = vpop.permute.xlu0 %500
        %503 = vrot.lane.b32.xlu0 %v264, 1
        %v504 = vpop.permute.xlu0 %503
        %v505 = vsel %vm284, %v504, %v501
        %v508 = vsel %vm284, %v501, %v504
        %v509 = vsel %vm244, %v495, %v508
        %v510 = vsel %vm245, %v499, %v505
        %v511 = vsel %vm246, %v508, %v495
        %v512 = vsel %vm247, %v505, %v499
        %v513 = vrot.slane %v264, 4
        %v514 = vrot.slane %v267, 4
        %v517 = vsel %vm297, %v509, %v513
        %v518 = vsel %vm297, %v510, %v514
        %s519 = scalar_lea.vmem [#allocation5], 8
        %v520 = vld [vmem:[%s519] sm:$0xf]
        %v522 = vsel %vm329, %v520, 0
        %v525 = vsel %vm297, %v511, 0
        %v528 = vsel %vm297, %v512, 0
        %530 = vmatprep.subr.mxu0 %v518
        %531 = vmatpush1.msra.mxu0 %v517
        %532 = vmatprep.subr.mxu0 %v528
        %533 = vmatpush1.msra.mxu0 %v525
        %534 = vmatprep.subr.mxu0 0.0
        %535 = vmatpush1.msra.mxu0 0.0
        %536 = vmatprep.subr.mxu0 0.0
        %537 = vmatpush1.msra.mxu0 0.0
        %538 = vmatprep.subr.mxu0 0.0
        %539 = vmatpush1.msra.mxu0 0.0
        %540 = vmatprep.subr.mxu0 0.0
        %541 = vmatpush1.msra.mxu0 0.0
        %542 = vmatprep.subr.mxu0 0.0
        %543 = vmatpush1.msra.mxu0 0.0
        %544 = vmatprep.subr.mxu0 0.0
        %545 = vmatpush1.msra.mxu0 0.0
        %546 = vmatprep.subr.mxu0 0.0
        %547 = vmatpush1.msra.mxu0 0.0
        %548 = vmatprep.subr.mxu0 0.0
        %549 = vmatpush1.msra.mxu0 0.0
        %550 = vmatprep.subr.mxu0 0.0
        %551 = vmatpush1.msra.mxu0 0.0
        %552 = vmatprep.subr.mxu0 0.0
        %553 = vmatpush1.msra.mxu0 0.0
        %554 = vmatprep.subr.mxu0 0.0
        %555 = vmatpush1.msra.mxu0 0.0
        %556 = vmatprep.subr.mxu0 0.0
        %557 = vmatpush1.msra.mxu0 0.0
        %558 = vmatprep.subr.mxu0 0.0
        %559 = vmatpush1.msra.mxu0 0.0
        %560 = vmatprep.subr.mxu0 0.0
        %561 = vmatpush1.msra.mxu0 0.0
        %562 = vmatprep.subr.mxu0 0.0
        %563 = vmatpush1.msra.mxu0 0.0
        %564 = vmatprep.subr.mxu0 0.0
        %565 = vmatpush1.msra.mxu0 0.0
        %566 = vmatprep.subr.mxu0 0.0
        %567 = vmatpush1.msra.mxu0 0.0
        %568 = vmatprep.subr.mxu0 0.0
        %569 = vmatpush1.msra.mxu0 0.0
        %570 = vmatprep.subr.mxu0 0.0
        %571 = vmatpush1.msra.mxu0 0.0
        %572 = vmatprep.subr.mxu0 0.0
        %573 = vmatpush1.msra.mxu0 0.0
        %574 = vmatprep.subr.mxu0 0.0
        %575 = vmatpush1.msra.mxu0 0.0
        %576 = vmatprep.subr.mxu0 0.0
        %577 = vmatpush1.msra.mxu0 0.0
        %578 = vmatprep.subr.mxu0 0.0
        %579 = vmatpush1.msra.mxu0 0.0
        %580 = vmatprep.subr.mxu0 0.0
        %581 = vmatpush1.msra.mxu0 0.0
        %582 = vmatprep.subr.mxu0 0.0
        %583 = vmatpush1.msra.mxu0 0.0
        %584 = vmatprep.subr.mxu0 0.0
        %585 = vmatpush1.msra.mxu0 0.0
        %586 = vmatprep.subr.mxu0 0.0
        %587 = vmatpush1.msra.mxu0 0.0
        %588 = vmatprep.subr.mxu0 0.0
        %589 = vmatpush1.msra.mxu0 0.0
        %590 = vmatprep.subr.mxu0 0.0
        %591 = vmatpush1.msra.mxu0 0.0
        %592 = vmatprep.subr.mxu0 0.0
        %593 = vmatpush1.msra.mxu0 0.0
        %594 = vmatprep.mubr.f32.mxu0 0.0
        %595 = vmatmul.mubr.f32.gmra.mrb[0].mxu0 %v522
        %v596 = vpop.f32.mrb[0].mxu0
        %v597 = vadd.f32 0.0, %v596
        %v598 = vpop.f32.mrb[0].mxu0
        %v599 = vadd.f32 0.0, %v598
        %600 = vdwg.mxu0
        %v601 = vadd.f32 %v486, %v597
        %v602 = vadd.f32 %v488, %v599
        %v603 = vsel %vm297, %v601, 0.0
        %v604 = vsel %vm297, %v602, 0.0
        %v605 = vadd.f32 %v603, %v604
        %606 = vadd.xlane.f32.xlu0 %v605
        %v607 = vpop.xlane.xlu0 %606
        %v608 = vmul.f32 %v607, 0.00390625
        %v609 = vsub.f32 %v601, %v608
        %v610 = vsub.f32 %v602, %v608
        %v611 = vmul.f32 %v609, %v609
        %v612 = vmul.f32 %v610, %v610
        %v613 = vsel %vm297, %v611, 0.0
        %v614 = vsel %vm297, %v612, 0.0
        %v615 = vadd.f32 %v613, %v614
        %616 = vadd.xlane.f32.xlu0 %v615
        %v617 = vpop.xlane.xlu0 %616
        %v618 = vmul.f32 %v617, 0.00390625
        %v619 = vadd.f32 %v618, 1e-05
        %v620 = vrsqrt.pop %v619
        %v621 = vmul.f32 %v609, %v620
        %v622 = vmul.f32 %v610, %v620
        %v623 = vmax.f32 %v621, 0.0
        %v624 = vmax.f32 %v622, 0.0
        %626 = vrot.lane.b32.xlu0 %v623, 112
        %v627 = vpop.permute.xlu0 %626
        %630 = vrot.lane.b32.xlu0 %v623, 16
        %v631 = vpop.permute.xlu0 %630
        %632 = vrot.lane.b32.xlu0 %v624, 16
        %v633 = vpop.permute.xlu0 %632
        %v634 = vsel %vm257, %v631, %v633
        %v636 = vsel %vm257, %v627, %v631
        %637 = vrot.lane.b32.xlu0 %v624, 112
        %v638 = vpop.permute.xlu0 %637
        %v639 = vsel %vm263, %v627, %v638
        %v642 = vsel %vm263, %v638, %v633
        %644 = vrot.lane.b32.xlu0 %v636, 127
        %v645 = vpop.permute.xlu0 %644
        %646 = vrot.lane.b32.xlu0 %v634, 127
        %v647 = vpop.permute.xlu0 %646
        %v648 = vsel %vm273, %v645, %v647
        %v652 = vsel %vm273, %v647, %v645
        %653 = vrot.lane.b32.xlu0 %v634, 1
        %v654 = vpop.permute.xlu0 %653
        %656 = vrot.lane.b32.xlu0 %v636, 1
        %v657 = vpop.permute.xlu0 %656
        %v658 = vsel %vm284, %v657, %v654
        %v661 = vsel %vm284, %v654, %v657
        %v662 = vsel %vm244, %v648, %v661
        %v663 = vsel %vm245, %v652, %v658
        %v664 = vsel %vm246, %v661, %v648
        %v665 = vsel %vm247, %v658, %v652
        %v666 = vrot.slane %v636, 4
        %v667 = vrot.slane %v634, 4
        %v670 = vsel %vm297, %v662, %v666
        %v671 = vsel %vm297, %v663, %v667
        %v672 = vld [vmem:[#allocation7] sm:$0xf]
        %673 = vrot.lane.b32.xlu0 %v623, 127
        %v674 = vpop.permute.xlu0 %673
        %675 = vrot.lane.b32.xlu0 %v624, 127
        %v676 = vpop.permute.xlu0 %675
        %v677 = vsel %vm273, %v674, %v676
        %v681 = vsel %vm273, %v676, %v674
        %682 = vrot.lane.b32.xlu0 %v624, 1
        %v683 = vpop.permute.xlu0 %682
        %685 = vrot.lane.b32.xlu0 %v623, 1
        %v686 = vpop.permute.xlu0 %685
        %v687 = vsel %vm284, %v686, %v683
        %v690 = vsel %vm284, %v683, %v686
        %v691 = vsel %vm244, %v677, %v690
        %v692 = vsel %vm245, %v681, %v687
        %v693 = vsel %vm246, %v690, %v677
        %v694 = vsel %vm247, %v687, %v681
        %v695 = vrot.slane %v623, 4
        %v696 = vrot.slane %v624, 4
        %v699 = vsel %vm297, %v691, %v695
        %v700 = vsel %vm297, %v692, %v696
        %s701 = scalar_lea.vmem [#allocation7], 4
        %v702 = vld [vmem:[%s701] sm:$0xf]
        %v704 = vsel %vm329, %v702, 0
        %v707 = vsel %vm297, %v693, 0
        %v710 = vsel %vm297, %v694, 0
        %712 = vmatprep.subr.mxu0 %v700
        %713 = vmatpush1.msra.mxu0 %v699
        %714 = vmatprep.subr.mxu0 %v710
        %715 = vmatpush1.msra.mxu0 %v707
        %716 = vmatprep.subr.mxu0 0.0
        %717 = vmatpush1.msra.mxu0 0.0
        %718 = vmatprep.subr.mxu0 0.0
        %719 = vmatpush1.msra.mxu0 0.0
        %720 = vmatprep.subr.mxu0 0.0
        %721 = vmatpush1.msra.mxu0 0.0
        %722 = vmatprep.subr.mxu0 0.0
        %723 = vmatpush1.msra.mxu0 0.0
        %724 = vmatprep.subr.mxu0 0.0
        %725 = vmatpush1.msra.mxu0 0.0
        %726 = vmatprep.subr.mxu0 0.0
        %727 = vmatpush1.msra.mxu0 0.0
        %728 = vmatprep.subr.mxu0 0.0
        %729 = vmatpush1.msra.mxu0 0.0
        %730 = vmatprep.subr.mxu0 0.0
        %731 = vmatpush1.msra.mxu0 0.0
        %732 = vmatprep.subr.mxu0 0.0
        %733 = vmatpush1.msra.mxu0 0.0
        %734 = vmatprep.subr.mxu0 0.0
        %735 = vmatpush1.msra.mxu0 0.0
        %736 = vmatprep.subr.mxu0 0.0
        %737 = vmatpush1.msra.mxu0 0.0
        %738 = vmatprep.subr.mxu0 0.0
        %739 = vmatpush1.msra.mxu0 0.0
        %740 = vmatprep.subr.mxu0 0.0
        %741 = vmatpush1.msra.mxu0 0.0
        %742 = vmatprep.subr.mxu0 0.0
        %743 = vmatpush1.msra.mxu0 0.0
        %744 = vmatprep.subr.mxu0 0.0
        %745 = vmatpush1.msra.mxu0 0.0
        %746 = vmatprep.subr.mxu0 0.0
        %747 = vmatpush1.msra.mxu0 0.0
        %748 = vmatprep.subr.mxu0 0.0
        %749 = vmatpush1.msra.mxu0 0.0
        %750 = vmatprep.subr.mxu0 0.0
        %751 = vmatpush1.msra.mxu0 0.0
        %752 = vmatprep.subr.mxu0 0.0
        %753 = vmatpush1.msra.mxu0 0.0
        %754 = vmatprep.subr.mxu0 0.0
        %755 = vmatpush1.msra.mxu0 0.0
        %756 = vmatprep.subr.mxu0 0.0
        %757 = vmatpush1.msra.mxu0 0.0
        %758 = vmatprep.subr.mxu0 0.0
        %759 = vmatpush1.msra.mxu0 0.0
        %760 = vmatprep.subr.mxu0 0.0
        %761 = vmatpush1.msra.mxu0 0.0
        %762 = vmatprep.subr.mxu0 0.0
        %763 = vmatpush1.msra.mxu0 0.0
        %764 = vmatprep.subr.mxu0 0.0
        %765 = vmatpush1.msra.mxu0 0.0
        %766 = vmatprep.subr.mxu0 0.0
        %767 = vmatpush1.msra.mxu0 0.0
        %768 = vmatprep.subr.mxu0 0.0
        %769 = vmatpush1.msra.mxu0 0.0
        %770 = vmatprep.subr.mxu0 0.0
        %771 = vmatpush1.msra.mxu0 0.0
        %772 = vmatprep.subr.mxu0 0.0
        %773 = vmatpush1.msra.mxu0 0.0
        %774 = vmatprep.subr.mxu0 0.0
        %775 = vmatpush1.msra.mxu0 0.0
        %776 = vmatprep.mubr.f32.mxu0 0.0
        %777 = vmatmul.mubr.f32.gmra.mrb[0].mxu0 %v704
        %v778 = vpop.f32.mrb[0].mxu0
        %v779 = vadd.f32 0.0, %v778
        %v780 = vpop.f32.mrb[0].mxu0
        %v781 = vadd.f32 0.0, %v780
        %782 = vdwg.mxu0
        %v784 = vsel %vm329, %v672, 0
        %v787 = vsel %vm297, %v664, 0
        %v790 = vsel %vm297, %v665, 0
        %792 = vmatprep.subr.mxu0 %v671
        %793 = vmatpush1.msra.mxu0 %v670
        %794 = vmatprep.subr.mxu0 %v790
        %795 = vmatpush1.msra.mxu0 %v787
        %796 = vmatprep.subr.mxu0 0.0
        %797 = vmatpush1.msra.mxu0 0.0
        %798 = vmatprep.subr.mxu0 0.0
        %799 = vmatpush1.msra.mxu0 0.0
        %800 = vmatprep.subr.mxu0 0.0
        %801 = vmatpush1.msra.mxu0 0.0
        %802 = vmatprep.subr.mxu0 0.0
        %803 = vmatpush1.msra.mxu0 0.0
        %804 = vmatprep.subr.mxu0 0.0
        %805 = vmatpush1.msra.mxu0 0.0
        %806 = vmatprep.subr.mxu0 0.0
        %807 = vmatpush1.msra.mxu0 0.0
        %808 = vmatprep.subr.mxu0 0.0
        %809 = vmatpush1.msra.mxu0 0.0
        %810 = vmatprep.subr.mxu0 0.0
        %811 = vmatpush1.msra.mxu0 0.0
        %812 = vmatprep.subr.mxu0 0.0
        %813 = vmatpush1.msra.mxu0 0.0
        %814 = vmatprep.subr.mxu0 0.0
        %815 = vmatpush1.msra.mxu0 0.0
        %816 = vmatprep.subr.mxu0 0.0
        %817 = vmatpush1.msra.mxu0 0.0
        %818 = vmatprep.subr.mxu0 0.0
        %819 = vmatpush1.msra.mxu0 0.0
        %820 = vmatprep.subr.mxu0 0.0
        %821 = vmatpush1.msra.mxu0 0.0
        %822 = vmatprep.subr.mxu0 0.0
        %823 = vmatpush1.msra.mxu0 0.0
        %824 = vmatprep.subr.mxu0 0.0
        %825 = vmatpush1.msra.mxu0 0.0
        %826 = vmatprep.subr.mxu0 0.0
        %827 = vmatpush1.msra.mxu0 0.0
        %828 = vmatprep.subr.mxu0 0.0
        %829 = vmatpush1.msra.mxu0 0.0
        %830 = vmatprep.subr.mxu0 0.0
        %831 = vmatpush1.msra.mxu0 0.0
        %832 = vmatprep.subr.mxu0 0.0
        %833 = vmatpush1.msra.mxu0 0.0
        %834 = vmatprep.subr.mxu0 0.0
        %835 = vmatpush1.msra.mxu0 0.0
        %836 = vmatprep.subr.mxu0 0.0
        %837 = vmatpush1.msra.mxu0 0.0
        %838 = vmatprep.subr.mxu0 0.0
        %839 = vmatpush1.msra.mxu0 0.0
        %840 = vmatprep.subr.mxu0 0.0
        %841 = vmatpush1.msra.mxu0 0.0
        %842 = vmatprep.subr.mxu0 0.0
        %843 = vmatpush1.msra.mxu0 0.0
        %844 = vmatprep.subr.mxu0 0.0
        %845 = vmatpush1.msra.mxu0 0.0
        %846 = vmatprep.subr.mxu0 0.0
        %847 = vmatpush1.msra.mxu0 0.0
        %848 = vmatprep.subr.mxu0 0.0
        %849 = vmatpush1.msra.mxu0 0.0
        %850 = vmatprep.subr.mxu0 0.0
        %851 = vmatpush1.msra.mxu0 0.0
        %852 = vmatprep.subr.mxu0 0.0
        %853 = vmatpush1.msra.mxu0 0.0
        %854 = vmatprep.subr.mxu0 0.0
        %855 = vmatpush1.msra.mxu0 0.0
        %856 = vmatprep.mubr.f32.mxu0 0.0
        %857 = vmatmul.mubr.f32.gmra.mrb[0].mxu0 %v784
        %v858 = vpop.f32.mrb[0].mxu0
        %v859 = vadd.f32 %v779, %v858
        %v860 = vpop.f32.mrb[0].mxu0
        %v861 = vadd.f32 %v781, %v860
        %862 = vdwg.mxu0
        %864 = vrot.lane.b32.xlu0 %v639, 127
        %v865 = vpop.permute.xlu0 %864
        %866 = vrot.lane.b32.xlu0 %v642, 127
        %v867 = vpop.permute.xlu0 %866
        %v868 = vsel %vm273, %v865, %v867
        %v872 = vsel %vm273, %v867, %v865
        %873 = vrot.lane.b32.xlu0 %v642, 1
        %v874 = vpop.permute.xlu0 %873
        %876 = vrot.lane.b32.xlu0 %v639, 1
        %v877 = vpop.permute.xlu0 %876
        %v878 = vsel %vm284, %v877, %v874
        %v881 = vsel %vm284, %v874, %v877
        %v882 = vsel %vm244, %v868, %v881
        %v883 = vsel %vm245, %v872, %v878
        %v884 = vsel %vm246, %v881, %v868
        %v885 = vsel %vm247, %v878, %v872
        %v886 = vrot.slane %v639, 4
        %v887 = vrot.slane %v642, 4
        %v890 = vsel %vm297, %v882, %v886
        %v891 = vsel %vm297, %v883, %v887
        %s892 = scalar_lea.vmem [#allocation7], 8
        %v893 = vld [vmem:[%s892] sm:$0xf]
        %v895 = vsel %vm329, %v893, 0
        %v898 = vsel %vm297, %v884, 0
        %v901 = vsel %vm297, %v885, 0
        %903 = vmatprep.subr.mxu0 %v891
        %904 = vmatpush1.msra.mxu0 %v890
        %905 = vmatprep.subr.mxu0 %v901
        %906 = vmatpush1.msra.mxu0 %v898
        %907 = vmatprep.subr.mxu0 0.0
        %908 = vmatpush1.msra.mxu0 0.0
        %909 = vmatprep.subr.mxu0 0.0
        %910 = vmatpush1.msra.mxu0 0.0
        %911 = vmatprep.subr.mxu0 0.0
        %912 = vmatpush1.msra.mxu0 0.0
        %913 = vmatprep.subr.mxu0 0.0
        %914 = vmatpush1.msra.mxu0 0.0
        %915 = vmatprep.subr.mxu0 0.0
        %916 = vmatpush1.msra.mxu0 0.0
        %917 = vmatprep.subr.mxu0 0.0
        %918 = vmatpush1.msra.mxu0 0.0
        %919 = vmatprep.subr.mxu0 0.0
        %920 = vmatpush1.msra.mxu0 0.0
        %921 = vmatprep.subr.mxu0 0.0
        %922 = vmatpush1.msra.mxu0 0.0
        %923 = vmatprep.subr.mxu0 0.0
        %924 = vmatpush1.msra.mxu0 0.0
        %925 = vmatprep.subr.mxu0 0.0
        %926 = vmatpush1.msra.mxu0 0.0
        %927 = vmatprep.subr.mxu0 0.0
        %928 = vmatpush1.msra.mxu0 0.0
        %929 = vmatprep.subr.mxu0 0.0
        %930 = vmatpush1.msra.mxu0 0.0
        %931 = vmatprep.subr.mxu0 0.0
        %932 = vmatpush1.msra.mxu0 0.0
        %933 = vmatprep.subr.mxu0 0.0
        %934 = vmatpush1.msra.mxu0 0.0
        %935 = vmatprep.subr.mxu0 0.0
        %936 = vmatpush1.msra.mxu0 0.0
        %937 = vmatprep.subr.mxu0 0.0
        %938 = vmatpush1.msra.mxu0 0.0
        %939 = vmatprep.subr.mxu0 0.0
        %940 = vmatpush1.msra.mxu0 0.0
        %941 = vmatprep.subr.mxu0 0.0
        %942 = vmatpush1.msra.mxu0 0.0
        %943 = vmatprep.subr.mxu0 0.0
        %944 = vmatpush1.msra.mxu0 0.0
        %945 = vmatprep.subr.mxu0 0.0
        %946 = vmatpush1.msra.mxu0 0.0
        %947 = vmatprep.subr.mxu0 0.0
        %948 = vmatpush1.msra.mxu0 0.0
        %949 = vmatprep.subr.mxu0 0.0
        %950 = vmatpush1.msra.mxu0 0.0
        %951 = vmatprep.subr.mxu0 0.0
        %952 = vmatpush1.msra.mxu0 0.0
        %953 = vmatprep.subr.mxu0 0.0
        %954 = vmatpush1.msra.mxu0 0.0
        %955 = vmatprep.subr.mxu0 0.0
        %956 = vmatpush1.msra.mxu0 0.0
        %957 = vmatprep.subr.mxu0 0.0
        %958 = vmatpush1.msra.mxu0 0.0
        %959 = vmatprep.subr.mxu0 0.0
        %960 = vmatpush1.msra.mxu0 0.0
        %961 = vmatprep.subr.mxu0 0.0
        %962 = vmatpush1.msra.mxu0 0.0
        %963 = vmatprep.subr.mxu0 0.0
        %964 = vmatpush1.msra.mxu0 0.0
        %965 = vmatprep.subr.mxu0 0.0
        %966 = vmatpush1.msra.mxu0 0.0
        %967 = vmatprep.mubr.f32.mxu0 0.0
        %968 = vmatmul.mubr.f32.gmra.mrb[0].mxu0 %v895
        %v969 = vpop.f32.mrb[0].mxu0
        %v970 = vadd.f32 0.0, %v969
        %v971 = vpop.f32.mrb[0].mxu0
        %v972 = vadd.f32 0.0, %v971
        %973 = vdwg.mxu0
        %v974 = vadd.f32 %v859, %v970
        %v975 = vadd.f32 %v861, %v972
        %v976 = vsel %vm297, %v974, 0.0
        %v977 = vsel %vm297, %v975, 0.0
        %v978 = vadd.f32 %v976, %v977
        %979 = vadd.xlane.f32.xlu0 %v978
        %v980 = vpop.xlane.xlu0 %979
        %v981 = vmul.f32 %v980, 0.00390625
        %v982 = vsub.f32 %v974, %v981
        %v983 = vsub.f32 %v975, %v981
        %v984 = vmul.f32 %v982, %v982
        %v985 = vmul.f32 %v983, %v983
        %v986 = vsel %vm297, %v984, 0.0
        %v987 = vsel %vm297, %v985, 0.0
        %v988 = vadd.f32 %v986, %v987
        %989 = vadd.xlane.f32.xlu0 %v988
        %v990 = vpop.xlane.xlu0 %989
        %v991 = vmul.f32 %v990, 0.00390625
        %v992 = vadd.f32 %v991, 1e-05
        %v993 = vrsqrt.pop %v992
        %v994 = vmul.f32 %v982, %v993
        %v995 = vmul.f32 %v983, %v993
        %v997 = vadd.f32 %v994, %v216
        %v998 = vadd.f32 %v995, %v252
        %v1001 = vcombine.low %v997, %v998
        %1003 = vst [vmem:[%s215] sm:$0xff] %v1001
        %s1004 = sand.u32 %s97, 1
        %s1005 = scalar_lea.sflag [#allocation4], %s1004
        %s1006 = sand.u32 %s97, 1
        %s1007 = smul.addr %s1006, 8
        %s1008 = scalar_lea.vmem [#allocation8], %s1007
        // Predicated region
        $region45: #{tpu_custom_call.1} parent=31 // pred_check
          %p1009 = pneg %p107
        $region46: #{tpu_custom_call.1} parent=31 // pred_check_branch
          %1011 = sbr.rel (%p1009) target = $region48
        $region47: #{tpu_custom_call.1} parent=31 // pred_region
          %s1013 = ssub.s32 128, 128
          %1014 = vsyncadd %s1005, %s1013
          %s1015 = smul.addr %s21, 2
          %s1016 = smul.addr %s1015, 64
          %s1017 = scalar_lea.hbm %s3, %s1016
          %s1019 = sshll.u32 %s1008, 4
          %s1020 = int_to_ptr.vmem [resolvable:$true] %s1019
          %1022 = dma.vmem_to_hbm [thread:$0]  %s1020, 128, %s1017, %s1005
        $region48: #{tpu_custom_call.1} parent=31 // pred_fallthru
          _
      $region32: #{tpu_custom_call.1} parent=5 // pred_fallthru
        _
      %p1023 = scmp.le.s32.totalorder 2, %s16
      // Predicated region
      $region49: #{tpu_custom_call.1} parent=5 // pred_check
        %p1024 = pneg %p1023
      $region50: #{tpu_custom_call.1} parent=5 // pred_check_branch
        %1026 = sbr.rel (%p1024) target = $region52
      $region51: #{tpu_custom_call.1} parent=5 // pred_region
        %s1027 = ssub.s32 %s16, 2
        // Predicated region
        $region53: #{tpu_custom_call.1} parent=51 // pred_check
          %p1028 = pneg %p113
        $region54: #{tpu_custom_call.1} parent=51 // pred_check_branch
          %1030 = sbr.rel (%p1028) target = $region56
        $region55: #{tpu_custom_call.1} parent=51 // pred_region
          %s1031 = sand.u32 %s98, 1
          %s1032 = scalar_lea.sflag [#allocation4], %s1031
          %s1033 = sand.u32 %s98, 1
          %s1034 = smul.addr %s1033, 8
          %s1035 = scalar_lea.vmem [#allocation8], %s1034
          %1036 = dma.done %s1032, 128
        $region56: #{tpu_custom_call.1} parent=51 // pred_fallthru
          _
      $region52: #{tpu_custom_call.1} parent=5 // pred_fallthru
        _
    $region6: #{tpu_custom_call.1} parent=1 // loop_footer
      %s20 = sadd.s32 1, %s16
    $region7: #{tpu_custom_call.1} parent=1 // loop_footer_branch
      %15 = sbr.rel target = $region3
    $region8: #{tpu_custom_call.1} parent=1 // loop_exit
      _
    %1037 = vsyncpa [#allocation3], 1
    %s1038 = scalar_lea.sflag [#allocation3], 1
    %1039 = vsyncpa %s1038, 1
    %1040 = vsyncpa [#allocation6], 1
    %1041 = vsyncpa [#allocation4], 1
    %s1042 = scalar_lea.sflag [#allocation4], 1
    %1043 = vsyncpa %s1042, 1

</llo_original>
